<compile_context>
chip_gen: v5e
topology: v5e:2x2
jax: 0.10.0
libtpu: 0.0.40
codegen_flags: <defaults>
</compile_context>

<pallas_src>
import math

import jax
import jax.numpy as jnp
from jax.experimental import pallas as pl
from jax.experimental.pallas import tpu as pltpu

_LANE = 128          # hidden width padded to a multiple of this
_NEG_SLOPE = 0.01    # LeakyReLU slope


def _leaky_relu(x):
    # one mul + one max (cheaper than compare + mul + select)
    return jnp.maximum(x, _NEG_SLOPE * x)


def critic_mlp_kernel(x_ref, w1_ref, b1_ref, w2_ref, b2_ref, w3_ref, b3_ref, o_ref):
    # x tile: [TB, d_in] (already in the matmul dtype, typically bf16)
    x = x_ref[...].astype(w1_ref.dtype)

    # Layer 1: single fused MXU pass, bf16 operands, f32 accumulation.
    h1 = jnp.dot(x, w1_ref[...], preferred_element_type=jnp.float32) + b1_ref[...]
    h1 = _leaky_relu(h1)                                   # [TB, Hp] f32

    # Layer 2: Linear(Hp -> Hp) + LeakyReLU (cast LHS to the weight dtype so the
    # dot runs at the MXU's bf16 rate; accumulation stays f32).
    h2 = jnp.dot(h1.astype(w2_ref.dtype), w2_ref[...],
                 preferred_element_type=jnp.float32) + b2_ref[...]
    h2 = _leaky_relu(h2)                                   # [TB, Hp] f32

    # Output head off the MXU: VPU multiply + XLU lane reduction (both have
    # slack here), instead of an N=1 matmul that burns a full MXU pass.
    v = jnp.sum(h2 * w3_ref[...], axis=-1, keepdims=True) + b3_ref[0]
    # TODO(synk): a lane-dense (1, TB) out block would avoid TB/8 masked stores,
    # but writeback is only 4 B/row so the simple (TB, 1) store is kept.
    o_ref[...] = v.astype(o_ref.dtype)


def prepare_kernel_params(params, lane=_LANE, matmul_dtype=jnp.bfloat16):
    """Pad the hidden width to a multiple of `lane` and lay weights out for the
    kernel. Exact: padded hidden lanes stay identically zero through both
    LeakyReLU layers and contribute nothing to the head reduction.
      W1, W2 -> matmul_dtype (MXU operands); b1, b2, w3 (row), b3 stay f32."""
    w1, b1, w2, b2, w3, b3 = params
    hidden = w1.shape[1]
    hp = ((hidden + lane - 1) // lane) * lane
    pad = hp - hidden

    w1p = jnp.pad(w1, ((0, 0), (0, pad))).astype(matmul_dtype)     # (d_in, Hp)
    b1p = jnp.pad(b1, ((0, 0), (0, pad))).astype(jnp.float32)      # (1, Hp)
    w2p = jnp.pad(w2, ((0, pad), (0, pad))).astype(matmul_dtype)   # (Hp, Hp)
    b2p = jnp.pad(b2, ((0, 0), (0, pad))).astype(jnp.float32)      # (1, Hp)
    w3r = jnp.pad(w3, ((0, pad), (0, 0))).reshape(1, hp).astype(jnp.float32)  # (1, Hp) row
    b3s = jnp.asarray(b3, jnp.float32).reshape((1,))               # SMEM scalar
    return (w1p, b1p, w2p, b2p, w3r, b3s)


def critic_mlp_forward(obs_input, action_input, kernel_params,
                       obs_shape_n, action_shape_n, *, block_batch=2048):
    w1, b1, w2, b2, w3, b3 = kernel_params
    in_dtype = w1.dtype
    hp = w1.shape[1]

    # matches torch.cat([obs[:, :obs_n], act[:, :act_n]], dim=1); the 12-column
    # concat is trivial (48 B/row) and lets layer 1 be a single MXU pass.
    x = jnp.concatenate(
        [obs_input[:, :obs_shape_n].astype(in_dtype),
         action_input[:, :action_shape_n].astype(in_dtype)], axis=1)
    batch, d_in = x.shape

    block_batch = max(8, (block_batch // 8) * 8)
    if batch < 16:
        # single full-extent block (uses the "block == full array dim" exception)
        tb = batch
    else:
        # at least 2 blocks so the "parallel" axis shards across v7x's 2 TCs;
        # keep tb a multiple of 8 and capped so VMEM fits v5e's 16 MiB default.
        half = ((pl.cdiv(batch, 2) + 7) // 8) * 8
        tb = min(block_batch, half)
    grid_b = pl.cdiv(batch, tb)
    # No jnp.pad of the batch: if tb does not divide batch, the last tile is a
    # partial block — OOB input rows read garbage that only affects their own
    # masked output rows, and out-of-bounds output rows are never written.

    flops = 2 * batch * (d_in * hp + hp * hp + hp)
    bytes_accessed = (x.size * x.dtype.itemsize + batch * 4
                      + sum(int(a.size) * a.dtype.itemsize for a in kernel_params))

    const2d = lambda i: (0, 0)   # constant index map -> weight stays VMEM-resident

    out = pl.pallas_call(
        critic_mlp_kernel,
        out_shape=jax.ShapeDtypeStruct((batch, 1), jnp.float32),
        grid=(grid_b,),
        in_specs=[
            pl.BlockSpec((tb, d_in), lambda i: (i, 0)),            # x tile
            pl.BlockSpec(w1.shape, const2d),                       # W1  (d_in, Hp)
            pl.BlockSpec(b1.shape, const2d),                       # b1  (1, Hp)
            pl.BlockSpec(w2.shape, const2d),                       # W2  (Hp, Hp)
            pl.BlockSpec(b2.shape, const2d),                       # b2  (1, Hp)
            pl.BlockSpec(w3.shape, const2d),                       # w3 row (1, Hp)
            pl.BlockSpec(memory_space=pltpu.MemorySpace.SMEM),     # b3 scalar
        ],
        out_specs=pl.BlockSpec((tb, 1), lambda i: (i, 0)),
        compiler_params=pltpu.CompilerParams(
            dimension_semantics=("parallel",),
        ),
        cost_estimate=pl.CostEstimate(flops=flops, transcendentals=0,
                                      bytes_accessed=bytes_accessed),
    )(x, w1, b1, w2, b2, w3, b3)

    return out


# ---------------------------- init (matches PyTorch) ----------------------------

def xavier_uniform(key, fan_in, fan_out, gain):
    # nn.init.xavier_uniform_ semantics, returned as [in, out]
    bound = gain * math.sqrt(6.0 / (fan_in + fan_out))
    return jax.random.uniform(key, (fan_in, fan_out), jnp.float32, -bound, bound)


def linear_bias(key, fan_in, fan_out):
    # nn.Linear default bias init: U(-1/sqrt(fan_in), 1/sqrt(fan_in))
    bound = 1.0 / math.sqrt(fan_in)
    return jax.random.uniform(key, (1, fan_out), jnp.float32, -bound, bound)


def init_params(key, obs_shape_n, action_shape_n, hidden_size):
    gain = math.sqrt(2.0 / (1.0 + 0.01 ** 2))  # calculate_gain('leaky_relu')
    d_in = obs_shape_n + action_shape_n
    k = jax.random.split(key, 6)
    w1 = xavier_uniform(k[0], d_in, hidden_size, gain)
    b1 = linear_bias(k[1], d_in, hidden_size)
    w2 = xavier_uniform(k[2], hidden_size, hidden_size, gain)
    b2 = linear_bias(k[3], hidden_size, hidden_size)
    w3 = xavier_uniform(k[4], hidden_size, 1, gain)
    b3 = linear_bias(k[5], hidden_size, 1)
    return (w1, b1, w2, b2, w3, b3)


if __name__ == "__main__":
    obs_shape_n, action_shape_n, hidden_size = 8, 4, 32
    batch = 2

    key = jax.random.PRNGKey(0)
    k_obs, k_act, k_param = jax.random.split(key, 3)

    obs_input = jax.random.normal(k_obs, (batch, obs_shape_n), jnp.float32)
    action_input = jax.random.normal(k_act, (batch, action_shape_n), jnp.float32)

    params = init_params(k_param, obs_shape_n, action_shape_n, hidden_size)
    kparams = prepare_kernel_params(params)   # bf16 matmul weights, f32 biases/head

    value = critic_mlp_forward(obs_input, action_input, kparams,
                               obs_shape_n, action_shape_n)
    value = jax.block_until_ready(value)

    # plain-JAX f32 reference (matches the PyTorch forward, including slicing).
    w1, b1, w2, b2, w3, b3 = params
    x = jnp.concatenate([obs_input[:, :obs_shape_n],
                         action_input[:, :action_shape_n]], axis=1)
    a1 = x @ w1 + b1
    h1 = jnp.maximum(a1, 0.01 * a1)
    a2 = h1 @ w2 + b2
    h2 = jnp.maximum(a2, 0.01 * a2)
    ref = h2 @ w3 + b3

    assert value.shape == (batch, 1)
    # bf16 MXU operands (f32 accumulation) -> loosen tolerance vs the f32 reference.
    assert jnp.allclose(value, ref, atol=5e-2, rtol=5e-2), "mismatch vs reference"

    print("KERNEL_OK")
</pallas_src>

<mosaic_0001>
module attributes {stable_mosaic.version = 11 : i64} {
  func.func @critic_mlp_kernel(%arg0: i32, %arg1: memref<2x12xbf16, #tpu.memory_space<vmem>>, %arg2: memref<12x128xbf16, #tpu.memory_space<vmem>>, %arg3: memref<1x128xf32, #tpu.memory_space<vmem>>, %arg4: memref<128x128xbf16, #tpu.memory_space<vmem>>, %arg5: memref<1x128xf32, #tpu.memory_space<vmem>>, %arg6: memref<1x128xf32, #tpu.memory_space<vmem>>, %arg7: memref<1xf32, #tpu.memory_space<smem>>, %arg8: memref<2x1xf32, #tpu.memory_space<vmem>>) attributes {dimension_semantics = [#tpu.dimension_semantics<parallel>], iteration_bounds = array<i64: 1>, scalar_prefetch = 0 : i64, scratch_operands = 0 : i64, tpu.core_type = #tpu.core_type<tc>, window_params = [{transform_indices = @transform_0, window_bounds = array<i64: 2, 12>}, {pipeline_mode = #tpu.pipeline_mode<synchronous>, transform_indices = @transform_1, window_bounds = array<i64: 12, 128>}, {pipeline_mode = #tpu.pipeline_mode<synchronous>, transform_indices = @transform_2, window_bounds = array<i64: 1, 128>}, {pipeline_mode = #tpu.pipeline_mode<synchronous>, transform_indices = @transform_3, window_bounds = array<i64: 128, 128>}, {pipeline_mode = #tpu.pipeline_mode<synchronous>, transform_indices = @transform_4, window_bounds = array<i64: 1, 128>}, {pipeline_mode = #tpu.pipeline_mode<synchronous>, transform_indices = @transform_5, window_bounds = array<i64: 1, 128>}, {transform_indices = @transform_6, window_bounds = array<i64: 1>}, {transform_indices = @transform_7, window_bounds = array<i64: 2, 1>}]} {
    %c0 = arith.constant 0 : index
    %c0_0 = arith.constant 0 : index
    %0 = vector.load %arg1[%c0, %c0_0] : memref<2x12xbf16, #tpu.memory_space<vmem>>, vector<2x12xbf16>
    %c0_1 = arith.constant 0 : index
    %c0_2 = arith.constant 0 : index
    %1 = vector.load %arg2[%c0_1, %c0_2] : memref<12x128xbf16, #tpu.memory_space<vmem>>, vector<12x128xbf16>
    %cst = arith.constant dense<0.000000e+00> : vector<2x128xf32>
    %2 = tpu.matmul %0, %1, %cst {dimension_numbers = #tpu.dot_dimension_numbers<[1], [0], [0], [1], [0, 0, 1, 1], [], []>} : vector<2x12xbf16>, vector<12x128xbf16>, vector<2x128xf32> -> vector<2x128xf32>
    %c0_3 = arith.constant 0 : index
    %c0_4 = arith.constant 0 : index
    %3 = vector.load %arg3[%c0_3, %c0_4] : memref<1x128xf32, #tpu.memory_space<vmem>>, vector<1x128xf32>
    %4 = vector.broadcast %3 : vector<1x128xf32> to vector<2x128xf32>
    %5 = arith.addf %2, %4 : vector<2x128xf32>
    %cst_5 = arith.constant 0.00999999977 : f32
    %6 = vector.broadcast %cst_5 : f32 to vector<2x128xf32>
    %7 = arith.mulf %6, %5 : vector<2x128xf32>
    %8 = arith.maximumf %5, %7 : vector<2x128xf32>
    %9 = arith.truncf %8 : vector<2x128xf32> to vector<2x128xbf16>
    %c0_6 = arith.constant 0 : index
    %c0_7 = arith.constant 0 : index
    %10 = vector.load %arg4[%c0_6, %c0_7] : memref<128x128xbf16, #tpu.memory_space<vmem>>, vector<128x128xbf16>
    %cst_8 = arith.constant dense<0.000000e+00> : vector<2x128xf32>
    %11 = tpu.matmul %9, %10, %cst_8 {dimension_numbers = #tpu.dot_dimension_numbers<[1], [0], [0], [1], [0, 0, 1, 1], [], []>} : vector<2x128xbf16>, vector<128x128xbf16>, vector<2x128xf32> -> vector<2x128xf32>
    %c0_9 = arith.constant 0 : index
    %c0_10 = arith.constant 0 : index
    %12 = vector.load %arg5[%c0_9, %c0_10] : memref<1x128xf32, #tpu.memory_space<vmem>>, vector<1x128xf32>
    %13 = vector.broadcast %12 : vector<1x128xf32> to vector<2x128xf32>
    %14 = arith.addf %11, %13 : vector<2x128xf32>
    %cst_11 = arith.constant 0.00999999977 : f32
    %15 = vector.broadcast %cst_11 : f32 to vector<2x128xf32>
    %16 = arith.mulf %15, %14 : vector<2x128xf32>
    %17 = arith.maximumf %14, %16 : vector<2x128xf32>
    %c0_12 = arith.constant 0 : index
    %c0_13 = arith.constant 0 : index
    %18 = vector.load %arg6[%c0_12, %c0_13] : memref<1x128xf32, #tpu.memory_space<vmem>>, vector<1x128xf32>
    %19 = vector.broadcast %18 : vector<1x128xf32> to vector<2x128xf32>
    %20 = arith.mulf %17, %19 : vector<2x128xf32>
    %cst_14 = arith.constant dense<0.000000e+00> : vector<2xf32>
    %21 = vector.multi_reduction <add>, %20, %cst_14 [1] : vector<2x128xf32> to vector<2xf32>
    %22 = vector.shape_cast %21 : vector<2xf32> to vector<2x1xf32>
    %c0_15 = arith.constant 0 : index
    %23 = memref.load %arg7[%c0_15] : memref<1xf32, #tpu.memory_space<smem>>
    %24 = vector.broadcast %23 : f32 to vector<2x1xf32>
    %25 = arith.addf %22, %24 : vector<2x1xf32>
    %c0_16 = arith.constant 0 : index
    %c0_17 = arith.constant 0 : index
    %26 = vector.load %arg8[%c0_16, %c0_17] : memref<2x1xf32, #tpu.memory_space<vmem>>, vector<2x1xf32>
    tpu.vector_store %arg8[%c0_16, %c0_17], %25 {strides = array<i32>} : memref<2x1xf32, #tpu.memory_space<vmem>>, vector<2x1xf32>,
    return
  }
  func.func @transform_0(%arg0: i32) -> (i32, i32) {
    %c0_i32 = arith.constant 0 : i32
    %c0_i32_0 = arith.constant 0 : i32
    return %arg0, %c0_i32 : i32, i32
  }
  func.func @transform_1(%arg0: i32) -> (i32, i32) {
    %c0_i32 = arith.constant 0 : i32
    %c0_i32_0 = arith.constant 0 : i32
    %c0_i32_1 = arith.constant 0 : i32
    return %c0_i32, %c0_i32_0 : i32, i32
  }
  func.func @transform_2(%arg0: i32) -> (i32, i32) {
    %c0_i32 = arith.constant 0 : i32
    %c0_i32_0 = arith.constant 0 : i32
    %c0_i32_1 = arith.constant 0 : i32
    return %c0_i32, %c0_i32_0 : i32, i32
  }
  func.func @transform_3(%arg0: i32) -> (i32, i32) {
    %c0_i32 = arith.constant 0 : i32
    %c0_i32_0 = arith.constant 0 : i32
    %c0_i32_1 = arith.constant 0 : i32
    return %c0_i32, %c0_i32_0 : i32, i32
  }
  func.func @transform_4(%arg0: i32) -> (i32, i32) {
    %c0_i32 = arith.constant 0 : i32
    %c0_i32_0 = arith.constant 0 : i32
    %c0_i32_1 = arith.constant 0 : i32
    return %c0_i32, %c0_i32_0 : i32, i32
  }
  func.func @transform_5(%arg0: i32) -> (i32, i32) {
    %c0_i32 = arith.constant 0 : i32
    %c0_i32_0 = arith.constant 0 : i32
    %c0_i32_1 = arith.constant 0 : i32
    return %c0_i32, %c0_i32_0 : i32, i32
  }
  func.func @transform_6(%arg0: i32) -> i32 {
    %c0_i32 = arith.constant 0 : i32
    %c0_i32_0 = arith.constant 0 : i32
    return %c0_i32 : i32
  }
  func.func @transform_7(%arg0: i32) -> (i32, i32) {
    %c0_i32 = arith.constant 0 : i32
    %c0_i32_0 = arith.constant 0 : i32
    return %arg0, %c0_i32 : i32, i32
  }
}

</mosaic_0001>

<llo_original>
// kernel: tpu_custom_call.1
$region0: #{tpu_custom_call.1}
  #allocation0 [shape = 'u32[]', space=smem, size = 0x4, offset = 0x4, fixed_abs, tag = 'smem constant byte address 0x4 - core index']
  #allocation1 [shape = 'u32[72,128]{1,0:T(1,128)}', space=vmem, size = 0x9000, scoped, tag = 'internal scratch']
  #allocation2 [shape = 'f32[1]{0:T(128)S(6)}', space=smem, size = 0x200, scoped, tag = 'scoped memory for tpu_custom_call.1']
  %s0 = inlined_call_operand.vmem [shape: bf16[2,12], index: 0, kind: input, shape index: {}]
  %s1 = inlined_call_operand.hbm [shape: bf16[12,128], index: 1, kind: input, shape index: {}]
  %s2 = inlined_call_operand.vmem [shape: f32[1,128], index: 2, kind: input, shape index: {}]
  %s3 = inlined_call_operand.hbm [shape: bf16[128,128], index: 3, kind: input, shape index: {}]
  %s4 = inlined_call_operand.vmem [shape: f32[1,128], index: 4, kind: input, shape index: {}]
  %s5 = inlined_call_operand.vmem [shape: f32[1,128], index: 5, kind: input, shape index: {}]
  %s6 = inlined_call_operand.<no memory space> [shape: f32[1], index: 6, kind: input, shape index: {}]
  %s7 = inlined_call_operand.vmem [shape: f32[2,1], index: 7, kind: output, shape index: {}]
  %s8 = sld [smem:[#allocation0]]
  $region46: #{tpu_custom_call.1} parent=0
    _
  %s10 = ssub.s32 1, %s8
  %s11 = scalar_select 0, %s10, %s8
  %12 = sst [smem:[#allocation2]] %s6
  $region1: #{tpu_custom_call.1} parent=0
    #allocation3 [shape = 'u8[4096]{0}', space=vmem, size = 0x1000, scoped, tag = 'input window, operand 1, single buffered']
    #allocation4 [shape = 's32[1]{0}', space=sflag, size = 0x4, scoped, tag = 'scoped memory for tpu_custom_call.1']
    #allocation5 [shape = 'u8[32768]{0}', space=vmem, size = 0x8000, scoped, tag = 'input window, operand 3, single buffered']
    #allocation6 [shape = 's32[1]{0}', space=sflag, size = 0x4, scoped, tag = 'scoped memory for tpu_custom_call.1']
    %13 = vsyncpa [#allocation4], 0
    %14 = vsyncpa [#allocation6], 0
    // Predicated region
    $region2: #{tpu_custom_call.1} parent=1 // pred_check
      _
    $region3: #{tpu_custom_call.1} parent=1 // pred_check_branch
      %16 = sbr.rel (0) target = $region5
    $region4: #{tpu_custom_call.1} parent=1 // pred_region
      _
    $region5: #{tpu_custom_call.1} parent=1 // pred_fallthru
      _
    // Predicated region
    $region6: #{tpu_custom_call.1} parent=1 // pred_check
      _
    $region7: #{tpu_custom_call.1} parent=1 // pred_check_branch
      %18 = sbr.rel (0) target = $region9
    $region8: #{tpu_custom_call.1} parent=1 // pred_region
      %20 = vsyncadd [#allocation4], 0
      %s21 = sshll.u32 %s1, 4
      %s22 = int_to_ptr.hbm [resolvable:$true] %s21
      %s23 = sshll.u32 [#allocation3], 4
      %s24 = int_to_ptr.vmem [resolvable:$true] %s23
      %29 = dma.hbm_to_vmem [thread:$0]  %s22, 128, %s24, [#allocation4], 64, 64, 4
    $region9: #{tpu_custom_call.1} parent=1 // pred_fallthru
      _
    // Predicated region
    $region10: #{tpu_custom_call.1} parent=1 // pred_check
      _
    $region11: #{tpu_custom_call.1} parent=1 // pred_check_branch
      %31 = sbr.rel (0) target = $region13
    $region12: #{tpu_custom_call.1} parent=1 // pred_region
      _
    $region13: #{tpu_custom_call.1} parent=1 // pred_fallthru
      _
    // Predicated region
    $region14: #{tpu_custom_call.1} parent=1 // pred_check
      _
    $region15: #{tpu_custom_call.1} parent=1 // pred_check_branch
      %33 = sbr.rel (0) target = $region17
    $region16: #{tpu_custom_call.1} parent=1 // pred_region
      %35 = vsyncadd [#allocation6], 0
      %s36 = sshll.u32 %s3, 4
      %s37 = int_to_ptr.hbm [resolvable:$true] %s36
      %s38 = sshll.u32 [#allocation5], 4
      %s39 = int_to_ptr.vmem [resolvable:$true] %s38
      %44 = dma.hbm_to_vmem [thread:$0]  %s37, 1024, %s39, [#allocation6], 64, 64, 4
    $region17: #{tpu_custom_call.1} parent=1 // pred_fallthru
      _
    // Predicated region
    $region18: #{tpu_custom_call.1} parent=1 // pred_check
      _
    $region19: #{tpu_custom_call.1} parent=1 // pred_check_branch
      %46 = sbr.rel (0) target = $region21
    $region20: #{tpu_custom_call.1} parent=1 // pred_region
      _
    $region21: #{tpu_custom_call.1} parent=1 // pred_fallthru
      _
    // Predicated region
    $region22: #{tpu_custom_call.1} parent=1 // pred_check
      _
    $region23: #{tpu_custom_call.1} parent=1 // pred_check_branch
      %48 = sbr.rel (0) target = $region25
    $region24: #{tpu_custom_call.1} parent=1 // pred_region
      _
    $region25: #{tpu_custom_call.1} parent=1 // pred_fallthru
      _
    // Predicated region
    $region26: #{tpu_custom_call.1} parent=1 // pred_check
      _
    $region27: #{tpu_custom_call.1} parent=1 // pred_check_branch
      %50 = sbr.rel (0) target = $region29
    $region28: #{tpu_custom_call.1} parent=1 // pred_region
      _
    $region29: #{tpu_custom_call.1} parent=1 // pred_fallthru
      _
    // Predicated region
    $region30: #{tpu_custom_call.1} parent=1 // pred_check
      _
    $region31: #{tpu_custom_call.1} parent=1 // pred_check_branch
      %52 = sbr.rel (0) target = $region33
    $region32: #{tpu_custom_call.1} parent=1 // pred_region
      %54 = dma.done [#allocation4], 128
    $region33: #{tpu_custom_call.1} parent=1 // pred_fallthru
      _
    // Predicated region
    $region34: #{tpu_custom_call.1} parent=1 // pred_check
      _
    $region35: #{tpu_custom_call.1} parent=1 // pred_check_branch
      %56 = sbr.rel (0) target = $region37
    $region36: #{tpu_custom_call.1} parent=1 // pred_region
      %58 = dma.done [#allocation6], 1024
    $region37: #{tpu_custom_call.1} parent=1 // pred_fallthru
      _
    %v60 = vld [vmem:[%s0] sm:$0x1]
    %v61 = vld [vmem:[#allocation3] sm:$0xf]
    %v62 = vld [vmem:[#allocation3 + $0x4] sm:$0x3]
    %v63 = vld [vmem:[%s2] sm:$0x1]
    %v65 = vperm.slane %v63, 0
    %v69 = vunpack.c.l.b16 %v61
    %v70 = vunpack.c.l.b16 %v62
    %v71 = vpack.c.b16 %v70, %v69
    %vm72 = vcmask 97280
    %v74 = vsel %vm72, %v60, 0
    %vm76 = vcmask 1045504
    %v78 = vsel %vm76, %v71, 0
    %80 = vmatpush.bf16.msra.mxu0 0
    %81 = vmatpush.bf16.msra.mxu0 0
    %82 = vmatpush.bf16.msra.mxu0 0
    %83 = vmatpush.bf16.msra.mxu0 0
    %84 = vmatpush.bf16.msra.mxu0 0
    %85 = vmatpush.bf16.msra.mxu0 0
    %86 = vmatpush.bf16.msra.mxu0 0
    %87 = vmatpush.bf16.msra.mxu0 %v78
    %88 = vmatmul.bf16.gmra.mxu0 %v74
    %v89 = vpop.f32.mrf.mxu0
    %v90 = vadd.f32 %v65, %v89
    %v91 = vpop.f32.mrf.mxu0
    %92 = vdwg.mxu0
    %v93 = vmul.f32 %v90, 0.01
    %v94 = vmax.f32 %v90, %v93
    %v95 = vpack.c.bf16 %v94, %v94
    %v96 = vld [vmem:[#allocation5] sm:$0xf]
    %v97 = vld [vmem:[#allocation5 + $0x4] sm:$0xf]
    %v98 = vld [vmem:[#allocation5 + $0x8] sm:$0xf]
    %v99 = vld [vmem:[#allocation5 + $0xc] sm:$0xf]
    %v100 = vld [vmem:[#allocation5 + $0x10] sm:$0xf]
    %v101 = vld [vmem:[#allocation5 + $0x14] sm:$0xf]
    %v102 = vld [vmem:[#allocation5 + $0x18] sm:$0xf]
    %v103 = vld [vmem:[#allocation5 + $0x1c] sm:$0xf]
    %v104 = vld [vmem:[#allocation5 + $0x20] sm:$0xf]
    %v105 = vld [vmem:[#allocation5 + $0x24] sm:$0xf]
    %v106 = vld [vmem:[#allocation5 + $0x28] sm:$0xf]
    %v107 = vld [vmem:[#allocation5 + $0x2c] sm:$0xf]
    %v108 = vld [vmem:[#allocation5 + $0x30] sm:$0xf]
    %v109 = vld [vmem:[#allocation5 + $0x34] sm:$0xf]
    %v110 = vld [vmem:[#allocation5 + $0x38] sm:$0xf]
    %v111 = vld [vmem:[#allocation5 + $0x3c] sm:$0xf]
    %v112 = vld [vmem:[%s4] sm:$0x1]
    %v114 = vperm.slane %v112, 0
    %v132 = vunpack.c.l.b16 %v96
    %v133 = vunpack.c.l.b16 %v97
    %v134 = vunpack.c.l.b16 %v98
    %v135 = vunpack.c.l.b16 %v99
    %v136 = vunpack.c.l.b16 %v100
    %v137 = vunpack.c.l.b16 %v101
    %v138 = vunpack.c.l.b16 %v102
    %v139 = vunpack.c.l.b16 %v103
    %v140 = vunpack.c.l.b16 %v104
    %v141 = vunpack.c.l.b16 %v105
    %v142 = vunpack.c.l.b16 %v106
    %v143 = vunpack.c.l.b16 %v107
    %v144 = vunpack.c.l.b16 %v108
    %v145 = vunpack.c.l.b16 %v109
    %v146 = vunpack.c.l.b16 %v110
    %v147 = vunpack.c.l.b16 %v111
    %v148 = vpack.c.b16 %v133, %v132
    %v149 = vpack.c.b16 %v135, %v134
    %v150 = vpack.c.b16 %v137, %v136
    %v151 = vpack.c.b16 %v139, %v138
    %v152 = vpack.c.b16 %v141, %v140
    %v153 = vpack.c.b16 %v143, %v142
    %v154 = vpack.c.b16 %v145, %v144
    %v155 = vpack.c.b16 %v147, %v146
    %164 = vmatpush.bf16.msra.mxu0 %v155
    %165 = vmatpush.bf16.msra.mxu0 %v154
    %166 = vmatpush.bf16.msra.mxu0 %v153
    %167 = vmatpush.bf16.msra.mxu0 %v152
    %168 = vmatpush.bf16.msra.mxu0 %v151
    %169 = vmatpush.bf16.msra.mxu0 %v150
    %170 = vmatpush.bf16.msra.mxu0 %v149
    %171 = vmatpush.bf16.msra.mxu0 %v148
    %172 = vmatmul.bf16.gmra.mxu0 %v95
    %v173 = vpop.f32.mrf.mxu0
    %v174 = vadd.f32 %v114, %v173
    %v175 = vpop.f32.mrf.mxu0
    %176 = vdwg.mxu0
    %v177 = vmul.f32 %v174, 0.01
    %v178 = vmax.f32 %v174, %v177
    %v179 = vld [vmem:[%s5] sm:$0x1]
    %v181 = vperm.slane %v179, 0
    %v183 = vmul.f32 %v178, %v181
    %vm184 = vcmask 1041408
    %v185 = vsel %vm184, %v183, 0.0
    %186 = vadd.xlane.f32.xlu0 %v185
    %v187 = vpop.xlane.xlu0 %186
    %s188 = sld [smem:[#allocation2]]
    %v189 = vstv %s188
    %v190 = vadd.f32 %v187, %v189
    %vm191 = vcmask 1024
    %192 = vst.msk [vmem:[%s7] sm:$0x3] %vm191, %v190
    // Predicated region
    $region38: #{tpu_custom_call.1} parent=1 // pred_check
      _
    $region39: #{tpu_custom_call.1} parent=1 // pred_check_branch
      %194 = sbr.rel (0) target = $region41
    $region40: #{tpu_custom_call.1} parent=1 // pred_region
      _
    $region41: #{tpu_custom_call.1} parent=1 // pred_fallthru
      _
    // Predicated region
    $region42: #{tpu_custom_call.1} parent=1 // pred_check
      _
    $region43: #{tpu_custom_call.1} parent=1 // pred_check_branch
      %196 = sbr.rel (0) target = $region45
    $region44: #{tpu_custom_call.1} parent=1 // pred_region
      _
    $region45: #{tpu_custom_call.1} parent=1 // pred_fallthru
      _
    %197 = vsyncpa [#allocation4], 1
    %198 = vsyncpa [#allocation6], 1

</llo_original>
